<compile_context>
chip_gen: v7x
topology: tpu7x:2x2x1
jax: 0.10.0
libtpu: 0.0.40
codegen_flags: <defaults>
</compile_context>

<pallas_src>
import jax
import jax.numpy as jnp
from jax.experimental import pallas as pl
from jax.experimental.pallas import tpu as pltpu


# TODO(synk): the PyTorch module also stashes intermediate activations
# (self.linearactL1 / linearactR1 / linearact2) for getHiddenActivations();
# the fused kernel only returns the forward output.


def _round_up(n, m):
    return ((n + m - 1) // m) * m


def _mlp_kernel(x_ref, w1l_ref, b1l_ref, w1r_ref, b1r_ref,
                w2l_ref, w2r_ref, b2_ref, w3_ref, b3_ref, o_ref):
    """One batch tile, computed transposed (batch on the lane axis).

    x_ref   : (input_size, TB)         input tile = x^T
    w1*_ref : (H1/2, input_size/2)     b1*_ref : (H1/2, 1)
    w2*_ref : (H2, H1/2)               b2_ref  : (H2, 1)
    w3_ref  : (H2, 1)                  b3_ref  : (1, 1) scalar in SMEM
    o_ref   : (1, TB)                  lane-dense output row
    """
    in2 = w1l_ref.shape[1]

    xl = x_ref[:in2, :]                      # (in/2, TB)  left ear
    xr = x_ref[in2:, :]                      # (in/2, TB)  right ear

    # Layer 1 (per-ear Linear + LeakyReLU, slope 0.01):  h = W @ x^T + b
    h1l = jnp.dot(w1l_ref[...], xl, preferred_element_type=jnp.float32) + b1l_ref[...]
    h1r = jnp.dot(w1r_ref[...], xr, preferred_element_type=jnp.float32) + b1r_ref[...]
    h1l = jnp.where(h1l > 0, h1l, 0.01 * h1l)
    h1r = jnp.where(h1r > 0, h1r, 0.01 * h1r)

    # Layer 2 (ear fusion + Sigmoid):  W2 @ cat(hL, hR) == W2L @ hL + W2R @ hR
    z2 = (jnp.dot(w2l_ref[...], h1l, preferred_element_type=jnp.float32)
          + jnp.dot(w2r_ref[...], h1r, preferred_element_type=jnp.float32)
          + b2_ref[...])
    # sigmoid = 1 / (1 + exp(-z)); exp and approx reciprocal both run on the
    # EUP slot, keeping the VPU free of a generic f32 divide.
    h2 = pl.reciprocal(1.0 + jnp.exp(-z2), approx=True)          # (H2, TB)

    # Layer 3 (Linear to a single unit): VPU multiply + sublane reduce instead
    # of a degenerate N=1 MXU matmul; the result is already lane-dense (1, TB).
    out = jnp.sum(h2 * w3_ref[...], axis=0, keepdims=True) + b3_ref[0, 0]
    o_ref[...] = out.astype(o_ref.dtype)


def l3_split_binaural_forward(x, params, *, tile_batch=4096):
    """x: (B, input_size) f32. Returns (B, 1) f32."""
    B, input_size = x.shape
    in2 = input_size // 2

    w1l, b1l = params["w1l"], params["b1l"]
    w1r, b1r = params["w1r"], params["b1r"]
    w2l, w2r, b2 = params["w2l"], params["w2r"], params["b2"]
    w3, b3 = params["w3"], params["b3"]

    h1_2 = w1l.shape[0]
    h2 = w2l.shape[0]

    # Batch lives on the lane axis inside the kernel, so tiles are multiples
    # of 128 lanes; pad the batch up to a whole number of tiles.
    tb = max(128, _round_up(min(tile_batch, B), 128))
    bp = _round_up(B, tb)
    n_tiles = bp // tb

    x_t = x.T                                   # (input_size, B), batch on lanes
    if bp != B:
        x_t = jnp.pad(x_t, ((0, 0), (0, bp - B)))

    # Advisory cost so XLA can schedule/overlap around the custom call.
    weight_bytes = sum(int(a.size) * 4 for a in
                       (w1l, b1l, w1r, b1r, w2l, w2r, b2, w3, b3))
    cost = pl.CostEstimate(
        flops=int(2 * bp * (in2 * h1_2 * 2 + 2 * h1_2 * h2 + h2)),
        transcendentals=int(2 * bp * h2),
        bytes_accessed=int(bp * input_size * 4 + bp * 4 + weight_bytes),
    )

    def resident(a):
        # Full-array VMEM block with a constant index map: stays on-chip
        # across all grid steps (no re-DMA per tile).
        return pl.BlockSpec(a.shape, lambda i: (0, 0), memory_space=pltpu.VMEM)

    out = pl.pallas_call(
        _mlp_kernel,
        out_shape=jax.ShapeDtypeStruct((1, bp), jnp.float32),
        grid=(n_tiles,),
        in_specs=[
            pl.BlockSpec((input_size, tb), lambda i: (0, i),
                         memory_space=pltpu.VMEM),               # x^T tile
            resident(w1l), resident(b1l),
            resident(w1r), resident(b1r),
            resident(w2l), resident(w2r), resident(b2),
            resident(w3),
            pl.BlockSpec(memory_space=pltpu.SMEM),               # b3 scalar
        ],
        out_specs=pl.BlockSpec((1, tb), lambda i: (0, i),
                               memory_space=pltpu.VMEM),
        compiler_params=pltpu.CompilerParams(
            dimension_semantics=("parallel",),
            vmem_limit_bytes=32 * 1024 * 1024,
        ),
        cost_estimate=cost,
    )(x_t, w1l, b1l, w1r, b1r, w2l, w2r, b2, w3, b3)

    return out[0, :B].reshape(B, 1)


def init_params(key, input_size, hidden_l1, hidden_l2):
    """nn.Linear-style U(-1/sqrt(fan_in), 1/sqrt(fan_in)) init, stored in the
    kernel's transposed layout: weights (out_features, in_features), biases
    (out_features, 1)."""
    in2 = input_size // 2
    h1_2 = hidden_l1 // 2
    ks = jax.random.split(key, 8)

    def lin(kw, kb, fan_in, fan_out):
        bound = 1.0 / float(fan_in) ** 0.5
        w = jax.random.uniform(kw, (fan_out, fan_in), jnp.float32, -bound, bound)
        b = jax.random.uniform(kb, (fan_out, 1), jnp.float32, -bound, bound)
        return w, b

    w1l, b1l = lin(ks[0], ks[1], in2, h1_2)
    w1r, b1r = lin(ks[2], ks[3], in2, h1_2)
    # linear2 acts on the concatenated 2*h1_2 features; split its weight into
    # left/right halves so the kernel can fuse the ears without a concat.
    w2_full, b2 = lin(ks[4], ks[5], 2 * h1_2, hidden_l2)
    w2l, w2r = w2_full[:, :h1_2], w2_full[:, h1_2:]
    w3_full, b3 = lin(ks[6], ks[7], hidden_l2, 1)     # (1, h2), (1, 1)
    w3 = w3_full.T                                    # (h2, 1) column for the reduce
    return {"w1l": w1l, "b1l": b1l, "w1r": w1r, "b1r": b1r,
            "w2l": w2l, "w2r": w2r, "b2": b2, "w3": w3, "b3": b3}


def _reference_forward(x, p):
    """Pure-JAX reference matching the PyTorch forward (batch-major layout)."""
    in2 = p["w1l"].shape[1]
    xl, xr = x[:, :in2], x[:, in2:]
    leaky = lambda v: jnp.where(v > 0, v, 0.01 * v)
    h1l = leaky(xl @ p["w1l"].T + p["b1l"][:, 0])
    h1r = leaky(xr @ p["w1r"].T + p["b1r"][:, 0])
    h1 = jnp.concatenate([h1l, h1r], axis=1)
    w2 = jnp.concatenate([p["w2l"], p["w2r"]], axis=1)        # (h2, h1)
    h2 = jax.nn.sigmoid(h1 @ w2.T + p["b2"][:, 0])
    return h2 @ p["w3"] + p["b3"][0, 0]                       # (B, 1)


if __name__ == "__main__":
    # Small shapes consistent with the module: batch=8, input=16, hidden 32/32
    # (so each ear sees 8 inputs -> 16 hidden units).
    B, INPUT_SIZE, H1, H2 = 8, 16, 32, 32

    key = jax.random.PRNGKey(0)
    kx, kp = jax.random.split(key)
    x = jax.random.normal(kx, (B, INPUT_SIZE), dtype=jnp.float32)
    params = init_params(kp, INPUT_SIZE, H1, H2)

    out = l3_split_binaural_forward(x, params)
    out = jax.block_until_ready(out)

    ref = _reference_forward(x, params)
    assert out.shape == (B, 1)
    # Approx EUP reciprocal in the sigmoid + transposed accumulation order
    # => slightly looser tolerance than exact-f32 math.
    assert jnp.allclose(out, ref, atol=5e-3, rtol=5e-3), float(
        jnp.max(jnp.abs(out - ref)))

    print("KERNEL_OK")
</pallas_src>

<mosaic_0001>
module attributes {stable_mosaic.version = 11 : i64} {
  func.func @_mlp_kernel(%arg0: i32, %arg1: memref<16x128xf32, #tpu.memory_space<vmem>>, %arg2: memref<16x8xf32, #tpu.memory_space<vmem>>, %arg3: memref<16x1xf32, #tpu.memory_space<vmem>>, %arg4: memref<16x8xf32, #tpu.memory_space<vmem>>, %arg5: memref<16x1xf32, #tpu.memory_space<vmem>>, %arg6: memref<32x16xf32, #tpu.memory_space<vmem>>, %arg7: memref<32x16xf32, #tpu.memory_space<vmem>>, %arg8: memref<32x1xf32, #tpu.memory_space<vmem>>, %arg9: memref<32x1xf32, #tpu.memory_space<vmem>>, %arg10: memref<1x1xf32, #tpu.memory_space<smem>>, %arg11: memref<1x128xf32, #tpu.memory_space<vmem>>) attributes {dimension_semantics = [#tpu.dimension_semantics<parallel>], iteration_bounds = array<i64: 1>, scalar_prefetch = 0 : i64, scratch_operands = 0 : i64, tpu.core_type = #tpu.core_type<tc>, window_params = [{transform_indices = @transform_0, window_bounds = array<i64: 16, 128>}, {pipeline_mode = #tpu.pipeline_mode<synchronous>, transform_indices = @transform_1, window_bounds = array<i64: 16, 8>}, {pipeline_mode = #tpu.pipeline_mode<synchronous>, transform_indices = @transform_2, window_bounds = array<i64: 16, 1>}, {pipeline_mode = #tpu.pipeline_mode<synchronous>, transform_indices = @transform_3, window_bounds = array<i64: 16, 8>}, {pipeline_mode = #tpu.pipeline_mode<synchronous>, transform_indices = @transform_4, window_bounds = array<i64: 16, 1>}, {pipeline_mode = #tpu.pipeline_mode<synchronous>, transform_indices = @transform_5, window_bounds = array<i64: 32, 16>}, {pipeline_mode = #tpu.pipeline_mode<synchronous>, transform_indices = @transform_6, window_bounds = array<i64: 32, 16>}, {pipeline_mode = #tpu.pipeline_mode<synchronous>, transform_indices = @transform_7, window_bounds = array<i64: 32, 1>}, {pipeline_mode = #tpu.pipeline_mode<synchronous>, transform_indices = @transform_8, window_bounds = array<i64: 32, 1>}, {transform_indices = @transform_9, window_bounds = array<i64: 1, 1>}, {transform_indices = @transform_10, window_bounds = array<i64: 1, 128>}]} {
    %c0 = arith.constant 0 : index
    %c0_0 = arith.constant 0 : index
    %0 = vector.load %arg1[%c0, %c0_0] : memref<16x128xf32, #tpu.memory_space<vmem>>, vector<8x128xf32>
    %c8 = arith.constant 8 : index
    %c0_1 = arith.constant 0 : index
    %1 = vector.load %arg1[%c8, %c0_1] : memref<16x128xf32, #tpu.memory_space<vmem>>, vector<8x128xf32>
    %c0_2 = arith.constant 0 : index
    %c0_3 = arith.constant 0 : index
    %2 = vector.load %arg2[%c0_2, %c0_3] : memref<16x8xf32, #tpu.memory_space<vmem>>, vector<16x8xf32>
    %cst = arith.constant dense<0.000000e+00> : vector<16x128xf32>
    %3 = tpu.matmul %2, %0, %cst {dimension_numbers = #tpu.dot_dimension_numbers<[1], [0], [0], [1], [0, 0, 1, 1], [], []>} : vector<16x8xf32>, vector<8x128xf32>, vector<16x128xf32> -> vector<16x128xf32>
    %c0_4 = arith.constant 0 : index
    %c0_5 = arith.constant 0 : index
    %4 = vector.load %arg3[%c0_4, %c0_5] : memref<16x1xf32, #tpu.memory_space<vmem>>, vector<16x1xf32>
    %5 = vector.broadcast %4 : vector<16x1xf32> to vector<16x128xf32>
    %6 = arith.addf %3, %5 : vector<16x128xf32>
    %c0_6 = arith.constant 0 : index
    %c0_7 = arith.constant 0 : index
    %7 = vector.load %arg4[%c0_6, %c0_7] : memref<16x8xf32, #tpu.memory_space<vmem>>, vector<16x8xf32>
    %cst_8 = arith.constant dense<0.000000e+00> : vector<16x128xf32>
    %8 = tpu.matmul %7, %1, %cst_8 {dimension_numbers = #tpu.dot_dimension_numbers<[1], [0], [0], [1], [0, 0, 1, 1], [], []>} : vector<16x8xf32>, vector<8x128xf32>, vector<16x128xf32> -> vector<16x128xf32>
    %c0_9 = arith.constant 0 : index
    %c0_10 = arith.constant 0 : index
    %9 = vector.load %arg5[%c0_9, %c0_10] : memref<16x1xf32, #tpu.memory_space<vmem>>, vector<16x1xf32>
    %10 = vector.broadcast %9 : vector<16x1xf32> to vector<16x128xf32>
    %11 = arith.addf %8, %10 : vector<16x128xf32>
    %cst_11 = arith.constant 0.000000e+00 : f32
    %12 = vector.broadcast %cst_11 : f32 to vector<16x128xf32>
    %13 = arith.cmpf ogt, %6, %12 : vector<16x128xf32>
    %cst_12 = arith.constant 0.00999999977 : f32
    %14 = vector.broadcast %cst_12 : f32 to vector<16x128xf32>
    %15 = arith.mulf %14, %6 : vector<16x128xf32>
    %16 = arith.select %13, %6, %15 : vector<16x128xi1>, vector<16x128xf32>
    %cst_13 = arith.constant 0.000000e+00 : f32
    %17 = vector.broadcast %cst_13 : f32 to vector<16x128xf32>
    %18 = arith.cmpf ogt, %11, %17 : vector<16x128xf32>
    %cst_14 = arith.constant 0.00999999977 : f32
    %19 = vector.broadcast %cst_14 : f32 to vector<16x128xf32>
    %20 = arith.mulf %19, %11 : vector<16x128xf32>
    %21 = arith.select %18, %11, %20 : vector<16x128xi1>, vector<16x128xf32>
    %c0_15 = arith.constant 0 : index
    %c0_16 = arith.constant 0 : index
    %22 = vector.load %arg6[%c0_15, %c0_16] : memref<32x16xf32, #tpu.memory_space<vmem>>, vector<32x16xf32>
    %cst_17 = arith.constant dense<0.000000e+00> : vector<32x128xf32>
    %23 = tpu.matmul %22, %16, %cst_17 {dimension_numbers = #tpu.dot_dimension_numbers<[1], [0], [0], [1], [0, 0, 1, 1], [], []>} : vector<32x16xf32>, vector<16x128xf32>, vector<32x128xf32> -> vector<32x128xf32>
    %c0_18 = arith.constant 0 : index
    %c0_19 = arith.constant 0 : index
    %24 = vector.load %arg7[%c0_18, %c0_19] : memref<32x16xf32, #tpu.memory_space<vmem>>, vector<32x16xf32>
    %cst_20 = arith.constant dense<0.000000e+00> : vector<32x128xf32>
    %25 = tpu.matmul %24, %21, %cst_20 {dimension_numbers = #tpu.dot_dimension_numbers<[1], [0], [0], [1], [0, 0, 1, 1], [], []>} : vector<32x16xf32>, vector<16x128xf32>, vector<32x128xf32> -> vector<32x128xf32>
    %26 = arith.addf %23, %25 : vector<32x128xf32>
    %c0_21 = arith.constant 0 : index
    %c0_22 = arith.constant 0 : index
    %27 = vector.load %arg8[%c0_21, %c0_22] : memref<32x1xf32, #tpu.memory_space<vmem>>, vector<32x1xf32>
    %28 = vector.broadcast %27 : vector<32x1xf32> to vector<32x128xf32>
    %29 = arith.addf %26, %28 : vector<32x128xf32>
    %cst_23 = arith.constant 0.000000e+00 : f32
    %30 = vector.broadcast %cst_23 : f32 to vector<32x128xf32>
    %31 = arith.subf %30, %29 : vector<32x128xf32>
    %32 = math.exp %31 : vector<32x128xf32>
    %cst_24 = arith.constant 1.000000e+00 : f32
    %33 = vector.broadcast %cst_24 : f32 to vector<32x128xf32>
    %34 = arith.addf %33, %32 : vector<32x128xf32>
    %35 = tpu.reciprocal %34 {approx = true} : vector<32x128xf32> -> vector<32x128xf32>
    %c0_25 = arith.constant 0 : index
    %c0_26 = arith.constant 0 : index
    %36 = vector.load %arg9[%c0_25, %c0_26] : memref<32x1xf32, #tpu.memory_space<vmem>>, vector<32x1xf32>
    %37 = vector.broadcast %36 : vector<32x1xf32> to vector<32x128xf32>
    %38 = arith.mulf %35, %37 : vector<32x128xf32>
    %cst_27 = arith.constant dense<0.000000e+00> : vector<128xf32>
    %39 = vector.multi_reduction <add>, %38, %cst_27 [0] : vector<32x128xf32> to vector<128xf32>
    %40 = vector.shape_cast %39 : vector<128xf32> to vector<1x128xf32>
    %c0_28 = arith.constant 0 : index
    %c0_29 = arith.constant 0 : index
    %41 = memref.load %arg10[%c0_28, %c0_29] : memref<1x1xf32, #tpu.memory_space<smem>>
    %42 = vector.broadcast %41 : f32 to vector<1x128xf32>
    %43 = arith.addf %40, %42 : vector<1x128xf32>
    %c0_30 = arith.constant 0 : index
    %c0_31 = arith.constant 0 : index
    %44 = vector.load %arg11[%c0_30, %c0_31] : memref<1x128xf32, #tpu.memory_space<vmem>>, vector<1x128xf32>
    tpu.vector_store %arg11[%c0_30, %c0_31], %43 {strides = array<i32>} : memref<1x128xf32, #tpu.memory_space<vmem>>, vector<1x128xf32>,
    return
  }
  func.func @transform_0(%arg0: i32) -> (i32, i32) {
    %c0_i32 = arith.constant 0 : i32
    %c0_i32_0 = arith.constant 0 : i32
    return %c0_i32, %arg0 : i32, i32
  }
  func.func @transform_1(%arg0: i32) -> (i32, i32) {
    %c0_i32 = arith.constant 0 : i32
    %c0_i32_0 = arith.constant 0 : i32
    %c0_i32_1 = arith.constant 0 : i32
    return %c0_i32, %c0_i32_0 : i32, i32
  }
  func.func @transform_2(%arg0: i32) -> (i32, i32) {
    %c0_i32 = arith.constant 0 : i32
    %c0_i32_0 = arith.constant 0 : i32
    %c0_i32_1 = arith.constant 0 : i32
    return %c0_i32, %c0_i32_0 : i32, i32
  }
  func.func @transform_3(%arg0: i32) -> (i32, i32) {
    %c0_i32 = arith.constant 0 : i32
    %c0_i32_0 = arith.constant 0 : i32
    %c0_i32_1 = arith.constant 0 : i32
    return %c0_i32, %c0_i32_0 : i32, i32
  }
  func.func @transform_4(%arg0: i32) -> (i32, i32) {
    %c0_i32 = arith.constant 0 : i32
    %c0_i32_0 = arith.constant 0 : i32
    %c0_i32_1 = arith.constant 0 : i32
    return %c0_i32, %c0_i32_0 : i32, i32
  }
  func.func @transform_5(%arg0: i32) -> (i32, i32) {
    %c0_i32 = arith.constant 0 : i32
    %c0_i32_0 = arith.constant 0 : i32
    %c0_i32_1 = arith.constant 0 : i32
    return %c0_i32, %c0_i32_0 : i32, i32
  }
  func.func @transform_6(%arg0: i32) -> (i32, i32) {
    %c0_i32 = arith.constant 0 : i32
    %c0_i32_0 = arith.constant 0 : i32
    %c0_i32_1 = arith.constant 0 : i32
    return %c0_i32, %c0_i32_0 : i32, i32
  }
  func.func @transform_7(%arg0: i32) -> (i32, i32) {
    %c0_i32 = arith.constant 0 : i32
    %c0_i32_0 = arith.constant 0 : i32
    %c0_i32_1 = arith.constant 0 : i32
    return %c0_i32, %c0_i32_0 : i32, i32
  }
  func.func @transform_8(%arg0: i32) -> (i32, i32) {
    %c0_i32 = arith.constant 0 : i32
    %c0_i32_0 = arith.constant 0 : i32
    %c0_i32_1 = arith.constant 0 : i32
    return %c0_i32, %c0_i32_0 : i32, i32
  }
  func.func @transform_9(%arg0: i32) -> (i32, i32) {
    %c0_i32 = arith.constant 0 : i32
    %c0_i32_0 = arith.constant 0 : i32
    %c0_i32_1 = arith.constant 0 : i32
    return %c0_i32, %c0_i32_0 : i32, i32
  }
  func.func @transform_10(%arg0: i32) -> (i32, i32) {
    %c0_i32 = arith.constant 0 : i32
    %c0_i32_0 = arith.constant 0 : i32
    return %c0_i32, %arg0 : i32, i32
  }
}

</mosaic_0001>

<llo_original>
// kernel: tpu_custom_call.1
$region0: #{tpu_custom_call.1}
  #allocation0 [shape = 'u32[]', space=smem, size = 0x4, offset = 0x4, fixed_abs, tag = 'smem constant byte address 0x4 - core index']
  #allocation1 [shape = 'u32[144,128]{1,0:T(1,128)}', space=vmem, size = 0x12000, scoped, tag = 'internal scratch']
  #allocation2 [shape = 'f32[1,1]{1,0:T(1,128)S(6)}', space=smem, size = 0x200, scoped, tag = 'scoped memory for tpu_custom_call.1']
  %s0 = inlined_call_operand.vmem [shape: f32[16,128], index: 0, kind: input, shape index: {}]
  %s1 = inlined_call_operand.vmem [shape: f32[16,8], index: 1, kind: input, shape index: {}]
  %s2 = inlined_call_operand.vmem [shape: f32[16,1], index: 2, kind: input, shape index: {}]
  %s3 = inlined_call_operand.vmem [shape: f32[16,8], index: 3, kind: input, shape index: {}]
  %s4 = inlined_call_operand.vmem [shape: f32[16,1], index: 4, kind: input, shape index: {}]
  %s5 = inlined_call_operand.vmem [shape: f32[32,16], index: 5, kind: input, shape index: {}]
  %s6 = inlined_call_operand.vmem [shape: f32[32,16], index: 6, kind: input, shape index: {}]
  %s7 = inlined_call_operand.vmem [shape: f32[32,1], index: 7, kind: input, shape index: {}]
  %s8 = inlined_call_operand.vmem [shape: f32[32,1], index: 8, kind: input, shape index: {}]
  %s9 = inlined_call_operand.<no memory space> [shape: f32[1,1], index: 9, kind: input, shape index: {}]
  %s10 = inlined_call_operand.hbm [shape: f32[1,128], index: 10, kind: output, shape index: {}]
  %s11 = sld [smem:[#allocation0]]
  $region50: #{tpu_custom_call.1} parent=0
    _
  %s13 = ssub.s32 1, %s11
  %s14 = scalar_select 0, %s13, %s11
  %15 = sst [smem:[#allocation2]] %s9
  $region1: #{tpu_custom_call.1} parent=0
    #allocation3 [shape = 'u8[512]{0}', space=vmem, size = 0x400, scoped, tag = 'output window, operand 0, single buffered']
    #allocation4 [shape = 's32[1]{0}', space=sflag, size = 0x4, scoped, tag = 'scoped memory for tpu_custom_call.1']
    %16 = vsyncpa [#allocation4], 0
    // Predicated region
    $region2: #{tpu_custom_call.1} parent=1 // pred_check
      _
    $region3: #{tpu_custom_call.1} parent=1 // pred_check_branch
      %18 = sbr.rel (0) target = $region5
    $region4: #{tpu_custom_call.1} parent=1 // pred_region
      _
    $region5: #{tpu_custom_call.1} parent=1 // pred_fallthru
      _
    // Predicated region
    $region6: #{tpu_custom_call.1} parent=1 // pred_check
      _
    $region7: #{tpu_custom_call.1} parent=1 // pred_check_branch
      %20 = sbr.rel (0) target = $region9
    $region8: #{tpu_custom_call.1} parent=1 // pred_region
      _
    $region9: #{tpu_custom_call.1} parent=1 // pred_fallthru
      _
    // Predicated region
    $region10: #{tpu_custom_call.1} parent=1 // pred_check
      _
    $region11: #{tpu_custom_call.1} parent=1 // pred_check_branch
      %22 = sbr.rel (0) target = $region13
    $region12: #{tpu_custom_call.1} parent=1 // pred_region
      _
    $region13: #{tpu_custom_call.1} parent=1 // pred_fallthru
      _
    // Predicated region
    $region14: #{tpu_custom_call.1} parent=1 // pred_check
      _
    $region15: #{tpu_custom_call.1} parent=1 // pred_check_branch
      %24 = sbr.rel (0) target = $region17
    $region16: #{tpu_custom_call.1} parent=1 // pred_region
      _
    $region17: #{tpu_custom_call.1} parent=1 // pred_fallthru
      _
    // Predicated region
    $region18: #{tpu_custom_call.1} parent=1 // pred_check
      _
    $region19: #{tpu_custom_call.1} parent=1 // pred_check_branch
      %26 = sbr.rel (0) target = $region21
    $region20: #{tpu_custom_call.1} parent=1 // pred_region
      _
    $region21: #{tpu_custom_call.1} parent=1 // pred_fallthru
      _
    // Predicated region
    $region22: #{tpu_custom_call.1} parent=1 // pred_check
      _
    $region23: #{tpu_custom_call.1} parent=1 // pred_check_branch
      %28 = sbr.rel (0) target = $region25
    $region24: #{tpu_custom_call.1} parent=1 // pred_region
      _
    $region25: #{tpu_custom_call.1} parent=1 // pred_fallthru
      _
    // Predicated region
    $region26: #{tpu_custom_call.1} parent=1 // pred_check
      _
    $region27: #{tpu_custom_call.1} parent=1 // pred_check_branch
      %30 = sbr.rel (0) target = $region29
    $region28: #{tpu_custom_call.1} parent=1 // pred_region
      _
    $region29: #{tpu_custom_call.1} parent=1 // pred_fallthru
      _
    // Predicated region
    $region30: #{tpu_custom_call.1} parent=1 // pred_check
      _
    $region31: #{tpu_custom_call.1} parent=1 // pred_check_branch
      %32 = sbr.rel (0) target = $region33
    $region32: #{tpu_custom_call.1} parent=1 // pred_region
      _
    $region33: #{tpu_custom_call.1} parent=1 // pred_fallthru
      _
    // Predicated region
    $region34: #{tpu_custom_call.1} parent=1 // pred_check
      _
    $region35: #{tpu_custom_call.1} parent=1 // pred_check_branch
      %34 = sbr.rel (0) target = $region37
    $region36: #{tpu_custom_call.1} parent=1 // pred_region
      _
    $region37: #{tpu_custom_call.1} parent=1 // pred_fallthru
      _
    // Predicated region
    $region38: #{tpu_custom_call.1} parent=1 // pred_check
      _
    $region39: #{tpu_custom_call.1} parent=1 // pred_check_branch
      %36 = sbr.rel (0) target = $region41
    $region40: #{tpu_custom_call.1} parent=1 // pred_region
      _
    $region41: #{tpu_custom_call.1} parent=1 // pred_fallthru
      _
    %v37 = vld [vmem:[%s0] sm:$0xff]
    %v38 = vld [vmem:[%s0 + $0x8] sm:$0xff]
    %v39 = vld [vmem:[%s1] sm:$0xff]
    %v40 = vld [vmem:[%s1 + $0x8] sm:$0xff]
    %v41 = vld [vmem:[%s2] sm:$0xff]
    %v42 = vld [vmem:[%s2 + $0x8] sm:$0xff]
    %44 = vset.pattern.permute.xlu0 0
    %45 = vperm.xlu0 %44, %v41
    %v46 = vpop.permute.xlu0 %45
    %49 = vset.pattern.permute.xlu0 0
    %50 = vperm.xlu0 %49, %v42
    %v51 = vpop.permute.xlu0 %50
    %vm53 = vcmask 64512
    %v55 = vsel %vm53, %v39, 0
    %v58 = vsel %vm53, %v40, 0
    %60 = vmatprep.subr.mxu0 0.0
    %61 = vmatpush1.msra.mxu0 %v37
    %62 = vmatprep.subr.mxu0 0.0
    %63 = vmatpush1.msra.mxu0 0.0
    %64 = vmatprep.subr.mxu0 0.0
    %65 = vmatpush1.msra.mxu0 0.0
    %66 = vmatprep.subr.mxu0 0.0
    %67 = vmatpush1.msra.mxu0 0.0
    %68 = vmatprep.subr.mxu0 0.0
    %69 = vmatpush1.msra.mxu0 0.0
    %70 = vmatprep.subr.mxu0 0.0
    %71 = vmatpush1.msra.mxu0 0.0
    %72 = vmatprep.subr.mxu0 0.0
    %73 = vmatpush1.msra.mxu0 0.0
    %74 = vmatprep.subr.mxu0 0.0
    %75 = vmatpush1.msra.mxu0 0.0
    %76 = vmatprep.subr.mxu0 0.0
    %77 = vmatpush1.msra.mxu0 0.0
    %78 = vmatprep.subr.mxu0 0.0
    %79 = vmatpush1.msra.mxu0 0.0
    %80 = vmatprep.subr.mxu0 0.0
    %81 = vmatpush1.msra.mxu0 0.0
    %82 = vmatprep.subr.mxu0 0.0
    %83 = vmatpush1.msra.mxu0 0.0
    %84 = vmatprep.subr.mxu0 0.0
    %85 = vmatpush1.msra.mxu0 0.0
    %86 = vmatprep.subr.mxu0 0.0
    %87 = vmatpush1.msra.mxu0 0.0
    %88 = vmatprep.subr.mxu0 0.0
    %89 = vmatpush1.msra.mxu0 0.0
    %90 = vmatprep.subr.mxu0 0.0
    %91 = vmatpush1.msra.mxu0 0.0
    %92 = vmatprep.subr.mxu0 0.0
    %93 = vmatpush1.msra.mxu0 0.0
    %94 = vmatprep.subr.mxu0 0.0
    %95 = vmatpush1.msra.mxu0 0.0
    %96 = vmatprep.subr.mxu0 0.0
    %97 = vmatpush1.msra.mxu0 0.0
    %98 = vmatprep.subr.mxu0 0.0
    %99 = vmatpush1.msra.mxu0 0.0
    %100 = vmatprep.subr.mxu0 0.0
    %101 = vmatpush1.msra.mxu0 0.0
    %102 = vmatprep.subr.mxu0 0.0
    %103 = vmatpush1.msra.mxu0 0.0
    %104 = vmatprep.subr.mxu0 0.0
    %105 = vmatpush1.msra.mxu0 0.0
    %106 = vmatprep.subr.mxu0 0.0
    %107 = vmatpush1.msra.mxu0 0.0
    %108 = vmatprep.subr.mxu0 0.0
    %109 = vmatpush1.msra.mxu0 0.0
    %110 = vmatprep.subr.mxu0 0.0
    %111 = vmatpush1.msra.mxu0 0.0
    %112 = vmatprep.subr.mxu0 0.0
    %113 = vmatpush1.msra.mxu0 0.0
    %114 = vmatprep.subr.mxu0 0.0
    %115 = vmatpush1.msra.mxu0 0.0
    %116 = vmatprep.subr.mxu0 0.0
    %117 = vmatpush1.msra.mxu0 0.0
    %118 = vmatprep.subr.mxu0 0.0
    %119 = vmatpush1.msra.mxu0 0.0
    %120 = vmatprep.subr.mxu0 0.0
    %121 = vmatpush1.msra.mxu0 0.0
    %122 = vmatprep.subr.mxu0 0.0
    %123 = vmatpush1.msra.mxu0 0.0
    %124 = vmatprep.mubr.f32.mxu0 0.0
    %125 = vmatmul.mubr.f32.gmra.mrb[0].mxu0 %v55
    %v126 = vpop.f32.mrb[0].mxu0
    %v127 = vadd.f32 %v46, %v126
    %v128 = vpop.f32.mrb[0].mxu0
    %129 = vmatprep.mubr.f32.mxu0 0.0
    %130 = vmatmul.mubr.f32.gmra.mrb[0].mxu0 %v58
    %v131 = vpop.f32.mrb[0].mxu0
    %v132 = vadd.f32 %v51, %v131
    %v133 = vpop.f32.mrb[0].mxu0
    %134 = vdwg.mxu0
    %v135 = vld [vmem:[%s3] sm:$0xff]
    %v136 = vld [vmem:[%s3 + $0x8] sm:$0xff]
    %v137 = vld [vmem:[%s4] sm:$0xff]
    %v138 = vld [vmem:[%s4 + $0x8] sm:$0xff]
    %140 = vset.pattern.permute.xlu0 0
    %141 = vperm.xlu0 %140, %v137
    %v142 = vpop.permute.xlu0 %141
    %145 = vset.pattern.permute.xlu0 0
    %146 = vperm.xlu0 %145, %v138
    %v147 = vpop.permute.xlu0 %146
    %v150 = vsel %vm53, %v135, 0
    %v153 = vsel %vm53, %v136, 0
    %155 = vmatprep.subr.mxu0 0.0
    %156 = vmatpush1.msra.mxu0 %v38
    %157 = vmatprep.subr.mxu0 0.0
    %158 = vmatpush1.msra.mxu0 0.0
    %159 = vmatprep.subr.mxu0 0.0
    %160 = vmatpush1.msra.mxu0 0.0
    %161 = vmatprep.subr.mxu0 0.0
    %162 = vmatpush1.msra.mxu0 0.0
    %163 = vmatprep.subr.mxu0 0.0
    %164 = vmatpush1.msra.mxu0 0.0
    %165 = vmatprep.subr.mxu0 0.0
    %166 = vmatpush1.msra.mxu0 0.0
    %167 = vmatprep.subr.mxu0 0.0
    %168 = vmatpush1.msra.mxu0 0.0
    %169 = vmatprep.subr.mxu0 0.0
    %170 = vmatpush1.msra.mxu0 0.0
    %171 = vmatprep.subr.mxu0 0.0
    %172 = vmatpush1.msra.mxu0 0.0
    %173 = vmatprep.subr.mxu0 0.0
    %174 = vmatpush1.msra.mxu0 0.0
    %175 = vmatprep.subr.mxu0 0.0
    %176 = vmatpush1.msra.mxu0 0.0
    %177 = vmatprep.subr.mxu0 0.0
    %178 = vmatpush1.msra.mxu0 0.0
    %179 = vmatprep.subr.mxu0 0.0
    %180 = vmatpush1.msra.mxu0 0.0
    %181 = vmatprep.subr.mxu0 0.0
    %182 = vmatpush1.msra.mxu0 0.0
    %183 = vmatprep.subr.mxu0 0.0
    %184 = vmatpush1.msra.mxu0 0.0
    %185 = vmatprep.subr.mxu0 0.0
    %186 = vmatpush1.msra.mxu0 0.0
    %187 = vmatprep.subr.mxu0 0.0
    %188 = vmatpush1.msra.mxu0 0.0
    %189 = vmatprep.subr.mxu0 0.0
    %190 = vmatpush1.msra.mxu0 0.0
    %191 = vmatprep.subr.mxu0 0.0
    %192 = vmatpush1.msra.mxu0 0.0
    %193 = vmatprep.subr.mxu0 0.0
    %194 = vmatpush1.msra.mxu0 0.0
    %195 = vmatprep.subr.mxu0 0.0
    %196 = vmatpush1.msra.mxu0 0.0
    %197 = vmatprep.subr.mxu0 0.0
    %198 = vmatpush1.msra.mxu0 0.0
    %199 = vmatprep.subr.mxu0 0.0
    %200 = vmatpush1.msra.mxu0 0.0
    %201 = vmatprep.subr.mxu0 0.0
    %202 = vmatpush1.msra.mxu0 0.0
    %203 = vmatprep.subr.mxu0 0.0
    %204 = vmatpush1.msra.mxu0 0.0
    %205 = vmatprep.subr.mxu0 0.0
    %206 = vmatpush1.msra.mxu0 0.0
    %207 = vmatprep.subr.mxu0 0.0
    %208 = vmatpush1.msra.mxu0 0.0
    %209 = vmatprep.subr.mxu0 0.0
    %210 = vmatpush1.msra.mxu0 0.0
    %211 = vmatprep.subr.mxu0 0.0
    %212 = vmatpush1.msra.mxu0 0.0
    %213 = vmatprep.subr.mxu0 0.0
    %214 = vmatpush1.msra.mxu0 0.0
    %215 = vmatprep.subr.mxu0 0.0
    %216 = vmatpush1.msra.mxu0 0.0
    %217 = vmatprep.subr.mxu0 0.0
    %218 = vmatpush1.msra.mxu0 0.0
    %219 = vmatprep.mubr.f32.mxu0 0.0
    %220 = vmatmul.mubr.f32.gmra.mrb[0].mxu0 %v150
    %v221 = vpop.f32.mrb[0].mxu0
    %v222 = vadd.f32 %v142, %v221
    %v223 = vpop.f32.mrb[0].mxu0
    %224 = vmatprep.mubr.f32.mxu0 0.0
    %225 = vmatmul.mubr.f32.gmra.mrb[0].mxu0 %v153
    %v226 = vpop.f32.mrb[0].mxu0
    %v227 = vadd.f32 %v147, %v226
    %v228 = vpop.f32.mrb[0].mxu0
    %229 = vdwg.mxu0
    %vm230 = vcmp.gt.f32.partialorder %v127, 0.0
    %vm231 = vcmp.gt.f32.partialorder %v132, 0.0
    %v232 = vmul.f32 %v127, 0.01
    %v233 = vmul.f32 %v132, 0.01
    %v234 = vsel %vm230, %v127, %v232
    %v235 = vsel %vm231, %v132, %v233
    %vm236 = vcmp.gt.f32.partialorder %v222, 0.0
    %vm237 = vcmp.gt.f32.partialorder %v227, 0.0
    %v238 = vmul.f32 %v222, 0.01
    %v239 = vmul.f32 %v227, 0.01
    %v240 = vsel %vm236, %v222, %v238
    %v241 = vsel %vm237, %v227, %v239
    %v242 = vld [vmem:[%s5] sm:$0xff]
    %v243 = vld [vmem:[%s5 + $0x8] sm:$0xff]
    %v244 = vld [vmem:[%s5 + $0x10] sm:$0xff]
    %v245 = vld [vmem:[%s5 + $0x18] sm:$0xff]
    %v246 = vld [vmem:[%s6] sm:$0xff]
    %v247 = vld [vmem:[%s6 + $0x8] sm:$0xff]
    %v248 = vld [vmem:[%s6 + $0x10] sm:$0xff]
    %v249 = vld [vmem:[%s6 + $0x18] sm:$0xff]
    %vm250 = vcmask 130048
    %v252 = vsel %vm250, %v246, 0
    %v255 = vsel %vm250, %v247, 0
    %v258 = vsel %vm250, %v248, 0
    %v261 = vsel %vm250, %v249, 0
    %263 = vmatprep.subr.mxu0 0.0
    %264 = vmatpush1.msra.mxu0 %v240
    %265 = vmatprep.subr.mxu0 0.0
    %266 = vmatpush1.msra.mxu0 %v241
    %267 = vmatprep.subr.mxu0 0.0
    %268 = vmatpush1.msra.mxu0 0.0
    %269 = vmatprep.subr.mxu0 0.0
    %270 = vmatpush1.msra.mxu0 0.0
    %271 = vmatprep.subr.mxu0 0.0
    %272 = vmatpush1.msra.mxu0 0.0
    %273 = vmatprep.subr.mxu0 0.0
    %274 = vmatpush1.msra.mxu0 0.0
    %275 = vmatprep.subr.mxu0 0.0
    %276 = vmatpush1.msra.mxu0 0.0
    %277 = vmatprep.subr.mxu0 0.0
    %278 = vmatpush1.msra.mxu0 0.0
    %279 = vmatprep.subr.mxu0 0.0
    %280 = vmatpush1.msra.mxu0 0.0
    %281 = vmatprep.subr.mxu0 0.0
    %282 = vmatpush1.msra.mxu0 0.0
    %283 = vmatprep.subr.mxu0 0.0
    %284 = vmatpush1.msra.mxu0 0.0
    %285 = vmatprep.subr.mxu0 0.0
    %286 = vmatpush1.msra.mxu0 0.0
    %287 = vmatprep.subr.mxu0 0.0
    %288 = vmatpush1.msra.mxu0 0.0
    %289 = vmatprep.subr.mxu0 0.0
    %290 = vmatpush1.msra.mxu0 0.0
    %291 = vmatprep.subr.mxu0 0.0
    %292 = vmatpush1.msra.mxu0 0.0
    %293 = vmatprep.subr.mxu0 0.0
    %294 = vmatpush1.msra.mxu0 0.0
    %295 = vmatprep.subr.mxu0 0.0
    %296 = vmatpush1.msra.mxu0 0.0
    %297 = vmatprep.subr.mxu0 0.0
    %298 = vmatpush1.msra.mxu0 0.0
    %299 = vmatprep.subr.mxu0 0.0
    %300 = vmatpush1.msra.mxu0 0.0
    %301 = vmatprep.subr.mxu0 0.0
    %302 = vmatpush1.msra.mxu0 0.0
    %303 = vmatprep.subr.mxu0 0.0
    %304 = vmatpush1.msra.mxu0 0.0
    %305 = vmatprep.subr.mxu0 0.0
    %306 = vmatpush1.msra.mxu0 0.0
    %307 = vmatprep.subr.mxu0 0.0
    %308 = vmatpush1.msra.mxu0 0.0
    %309 = vmatprep.subr.mxu0 0.0
    %310 = vmatpush1.msra.mxu0 0.0
    %311 = vmatprep.subr.mxu0 0.0
    %312 = vmatpush1.msra.mxu0 0.0
    %313 = vmatprep.subr.mxu0 0.0
    %314 = vmatpush1.msra.mxu0 0.0
    %315 = vmatprep.subr.mxu0 0.0
    %316 = vmatpush1.msra.mxu0 0.0
    %317 = vmatprep.subr.mxu0 0.0
    %318 = vmatpush1.msra.mxu0 0.0
    %319 = vmatprep.subr.mxu0 0.0
    %320 = vmatpush1.msra.mxu0 0.0
    %321 = vmatprep.subr.mxu0 0.0
    %322 = vmatpush1.msra.mxu0 0.0
    %323 = vmatprep.subr.mxu0 0.0
    %324 = vmatpush1.msra.mxu0 0.0
    %325 = vmatprep.subr.mxu0 0.0
    %326 = vmatpush1.msra.mxu0 0.0
    %327 = vmatprep.mubr.f32.mxu0 0.0
    %328 = vmatmul.mubr.f32.gmra.mrb[0].mxu0 %v252
    %v329 = vpop.f32.mrb[0].mxu0
    %v330 = vadd.f32 0.0, %v329
    %v331 = vpop.f32.mrb[0].mxu0
    %332 = vmatprep.mubr.f32.mxu0 0.0
    %333 = vmatmul.mubr.f32.gmra.mrb[0].mxu0 %v255
    %v334 = vpop.f32.mrb[0].mxu0
    %v335 = vadd.f32 0.0, %v334
    %v336 = vpop.f32.mrb[0].mxu0
    %337 = vmatprep.mubr.f32.mxu0 0.0
    %338 = vmatmul.mubr.f32.gmra.mrb[0].mxu0 %v258
    %v339 = vpop.f32.mrb[0].mxu0
    %v340 = vadd.f32 0.0, %v339
    %v341 = vpop.f32.mrb[0].mxu0
    %342 = vmatprep.mubr.f32.mxu0 0.0
    %343 = vmatmul.mubr.f32.gmra.mrb[0].mxu0 %v261
    %v344 = vpop.f32.mrb[0].mxu0
    %v345 = vadd.f32 0.0, %v344
    %v346 = vpop.f32.mrb[0].mxu0
    %347 = vdwg.mxu0
    %v349 = vsel %vm250, %v242, 0
    %v352 = vsel %vm250, %v243, 0
    %v355 = vsel %vm250, %v244, 0
    %v358 = vsel %vm250, %v245, 0
    %360 = vmatprep.subr.mxu0 0.0
    %361 = vmatpush1.msra.mxu0 %v234
    %362 = vmatprep.subr.mxu0 0.0
    %363 = vmatpush1.msra.mxu0 %v235
    %364 = vmatprep.subr.mxu0 0.0
    %365 = vmatpush1.msra.mxu0 0.0
    %366 = vmatprep.subr.mxu0 0.0
    %367 = vmatpush1.msra.mxu0 0.0
    %368 = vmatprep.subr.mxu0 0.0
    %369 = vmatpush1.msra.mxu0 0.0
    %370 = vmatprep.subr.mxu0 0.0
    %371 = vmatpush1.msra.mxu0 0.0
    %372 = vmatprep.subr.mxu0 0.0
    %373 = vmatpush1.msra.mxu0 0.0
    %374 = vmatprep.subr.mxu0 0.0
    %375 = vmatpush1.msra.mxu0 0.0
    %376 = vmatprep.subr.mxu0 0.0
    %377 = vmatpush1.msra.mxu0 0.0
    %378 = vmatprep.subr.mxu0 0.0
    %379 = vmatpush1.msra.mxu0 0.0
    %380 = vmatprep.subr.mxu0 0.0
    %381 = vmatpush1.msra.mxu0 0.0
    %382 = vmatprep.subr.mxu0 0.0
    %383 = vmatpush1.msra.mxu0 0.0
    %384 = vmatprep.subr.mxu0 0.0
    %385 = vmatpush1.msra.mxu0 0.0
    %386 = vmatprep.subr.mxu0 0.0
    %387 = vmatpush1.msra.mxu0 0.0
    %388 = vmatprep.subr.mxu0 0.0
    %389 = vmatpush1.msra.mxu0 0.0
    %390 = vmatprep.subr.mxu0 0.0
    %391 = vmatpush1.msra.mxu0 0.0
    %392 = vmatprep.subr.mxu0 0.0
    %393 = vmatpush1.msra.mxu0 0.0
    %394 = vmatprep.subr.mxu0 0.0
    %395 = vmatpush1.msra.mxu0 0.0
    %396 = vmatprep.subr.mxu0 0.0
    %397 = vmatpush1.msra.mxu0 0.0
    %398 = vmatprep.subr.mxu0 0.0
    %399 = vmatpush1.msra.mxu0 0.0
    %400 = vmatprep.subr.mxu0 0.0
    %401 = vmatpush1.msra.mxu0 0.0
    %402 = vmatprep.subr.mxu0 0.0
    %403 = vmatpush1.msra.mxu0 0.0
    %404 = vmatprep.subr.mxu0 0.0
    %405 = vmatpush1.msra.mxu0 0.0
    %406 = vmatprep.subr.mxu0 0.0
    %407 = vmatpush1.msra.mxu0 0.0
    %408 = vmatprep.subr.mxu0 0.0
    %409 = vmatpush1.msra.mxu0 0.0
    %410 = vmatprep.subr.mxu0 0.0
    %411 = vmatpush1.msra.mxu0 0.0
    %412 = vmatprep.subr.mxu0 0.0
    %413 = vmatpush1.msra.mxu0 0.0
    %414 = vmatprep.subr.mxu0 0.0
    %415 = vmatpush1.msra.mxu0 0.0
    %416 = vmatprep.subr.mxu0 0.0
    %417 = vmatpush1.msra.mxu0 0.0
    %418 = vmatprep.subr.mxu0 0.0
    %419 = vmatpush1.msra.mxu0 0.0
    %420 = vmatprep.subr.mxu0 0.0
    %421 = vmatpush1.msra.mxu0 0.0
    %422 = vmatprep.subr.mxu0 0.0
    %423 = vmatpush1.msra.mxu0 0.0
    %424 = vmatprep.mubr.f32.mxu0 0.0
    %425 = vmatmul.mubr.f32.gmra.mrb[0].mxu0 %v349
    %v426 = vpop.f32.mrb[0].mxu0
    %v427 = vadd.f32 %v330, %v426
    %v428 = vpop.f32.mrb[0].mxu0
    %429 = vmatprep.mubr.f32.mxu0 0.0
    %430 = vmatmul.mubr.f32.gmra.mrb[0].mxu0 %v352
    %v431 = vpop.f32.mrb[0].mxu0
    %v432 = vadd.f32 %v335, %v431
    %v433 = vpop.f32.mrb[0].mxu0
    %434 = vmatprep.mubr.f32.mxu0 0.0
    %435 = vmatmul.mubr.f32.gmra.mrb[0].mxu0 %v355
    %v436 = vpop.f32.mrb[0].mxu0
    %v437 = vadd.f32 %v340, %v436
    %v438 = vpop.f32.mrb[0].mxu0
    %439 = vmatprep.mubr.f32.mxu0 0.0
    %440 = vmatmul.mubr.f32.gmra.mrb[0].mxu0 %v358
    %v441 = vpop.f32.mrb[0].mxu0
    %v442 = vadd.f32 %v345, %v441
    %v443 = vpop.f32.mrb[0].mxu0
    %444 = vdwg.mxu0
    %v445 = vld [vmem:[%s7] sm:$0xff]
    %v446 = vld [vmem:[%s7 + $0x8] sm:$0xff]
    %v447 = vld [vmem:[%s7 + $0x10] sm:$0xff]
    %v448 = vld [vmem:[%s7 + $0x18] sm:$0xff]
    %450 = vset.pattern.permute.xlu0 0
    %451 = vperm.xlu0 %450, %v445
    %v452 = vpop.permute.xlu0 %451
    %455 = vset.pattern.permute.xlu0 0
    %456 = vperm.xlu0 %455, %v446
    %v457 = vpop.permute.xlu0 %456
    %460 = vset.pattern.permute.xlu0 0
    %461 = vperm.xlu0 %460, %v447
    %v462 = vpop.permute.xlu0 %461
    %465 = vset.pattern.permute.xlu0 0
    %466 = vperm.xlu0 %465, %v448
    %v467 = vpop.permute.xlu0 %466
    %v469 = vadd.f32 %v427, %v452
    %v470 = vadd.f32 %v432, %v457
    %v471 = vadd.f32 %v437, %v462
    %v472 = vadd.f32 %v442, %v467
    %v473 = vsub.f32 0.0, %v469
    %v474 = vsub.f32 0.0, %v470
    %v475 = vsub.f32 0.0, %v471
    %v476 = vsub.f32 0.0, %v472
    %v477 = vmul.f32 %v473, 1.442695
    %v478 = vpow.pop %v477
    %v479 = vmul.f32 %v474, 1.442695
    %v480 = vpow.pop %v479
    %v481 = vmul.f32 %v475, 1.442695
    %v482 = vpow.pop %v481
    %v483 = vmul.f32 %v476, 1.442695
    %v484 = vpow.pop %v483
    %v485 = vadd.f32 %v478, 1.0
    %v486 = vadd.f32 %v480, 1.0
    %v487 = vadd.f32 %v482, 1.0
    %v488 = vadd.f32 %v484, 1.0
    %v489 = vrcp.pop %v485
    %v490 = vrcp.pop %v486
    %v491 = vrcp.pop %v487
    %v492 = vrcp.pop %v488
    %v493 = vld [vmem:[%s8] sm:$0xff]
    %v494 = vld [vmem:[%s8 + $0x8] sm:$0xff]
    %v495 = vld [vmem:[%s8 + $0x10] sm:$0xff]
    %v496 = vld [vmem:[%s8 + $0x18] sm:$0xff]
    %498 = vset.pattern.permute.xlu0 0
    %499 = vperm.xlu0 %498, %v493
    %v500 = vpop.permute.xlu0 %499
    %503 = vset.pattern.permute.xlu0 0
    %504 = vperm.xlu0 %503, %v494
    %v505 = vpop.permute.xlu0 %504
    %508 = vset.pattern.permute.xlu0 0
    %509 = vperm.xlu0 %508, %v495
    %v510 = vpop.permute.xlu0 %509
    %513 = vset.pattern.permute.xlu0 0
    %514 = vperm.xlu0 %513, %v496
    %v515 = vpop.permute.xlu0 %514
    %v517 = vmul.f32 %v489, %v500
    %v518 = vmul.f32 %v490, %v505
    %v519 = vmul.f32 %v491, %v510
    %v520 = vmul.f32 %v492, %v515
    %v521 = vadd.f32 %v517, %v518
    %v522 = vadd.f32 %v521, %v519
    %v523 = vadd.f32 %v522, %v520
    %v524 = vrot.slane %v523, 4
    %v525 = vadd.f32 %v523, %v524
    %v526 = vrot.slane %v525, 2
    %v527 = vadd.f32 %v525, %v526
    %v528 = vrot.slane %v527, 1
    %v529 = vadd.f32 %v527, %v528
    %s530 = sld [smem:[#allocation2]]
    %v531 = vstv %s530
    %v532 = vadd.f32 %v529, %v531
    %533 = vst [vmem:[#allocation3] sm:$0x1] %v532
    // Predicated region
    $region42: #{tpu_custom_call.1} parent=1 // pred_check
      _
    $region43: #{tpu_custom_call.1} parent=1 // pred_check_branch
      %535 = sbr.rel (0) target = $region45
    $region44: #{tpu_custom_call.1} parent=1 // pred_region
      %s537 = ssub.s32 16, 16
      %538 = vsyncadd [#allocation4], %s537
      %s540 = sshll.u32 [#allocation3], 4
      %s541 = int_to_ptr.vmem [resolvable:$true] %s540
      %543 = dma.vmem_to_hbm [thread:$0]  %s541, 16, %s10, [#allocation4]
    $region45: #{tpu_custom_call.1} parent=1 // pred_fallthru
      _
    // Predicated region
    $region46: #{tpu_custom_call.1} parent=1 // pred_check
      _
    $region47: #{tpu_custom_call.1} parent=1 // pred_check_branch
      %545 = sbr.rel (0) target = $region49
    $region48: #{tpu_custom_call.1} parent=1 // pred_region
      %546 = dma.done [#allocation4], 16
    $region49: #{tpu_custom_call.1} parent=1 // pred_fallthru
      _
    %547 = vsyncpa [#allocation4], 1

</llo_original>
